<compile_context>
chip_gen: v7x
topology: tpu7x:2x2x1
jax: 0.10.0
libtpu: 0.0.40
codegen_flags: <defaults>
</compile_context>

<pallas_src>
import jax
import jax.numpy as jnp
from jax import lax
from jax.experimental import pallas as pl
from jax.experimental.pallas import tpu as pltpu

NEG_FILL = -1000000000.0  # exact constant used by masked_fill in the module


def _el_norm_score_kernel(mention_ref, entity_ref, mask_ref,
                          score_ref, m_out_ref, e_out_ref):
    # Full (Bt, ...) tile per grid step.
    m = mention_ref[...].astype(jnp.float32)          # (Bt, D)
    e = entity_ref[...].astype(jnp.float32)           # (Bt, N, D)

    # L2 normalization along the feature (last) dim, matching x / x.norm(dim=-1, keepdim=True).
    # rsqrt goes to the EUP slot; the multiply stays on the VPU (no divide).
    m_nrm = m * lax.rsqrt(jnp.sum(m * m, axis=-1, keepdims=True))
    e_nrm = e * lax.rsqrt(jnp.sum(e * e, axis=-1, keepdims=True))

    # simi[b, n] = sum_d e_nrm[b, n, d] * m_nrm[b, d]
    # VPU broadcast-multiply + lane reduction; avoids the (N,D)->(D,N) XLU transpose
    # and the nearly-empty (1,D)x(D,N) MXU matmul of the previous version.
    simi = jnp.sum(e_nrm * m_nrm[:, None, :], axis=-1)            # (Bt, N)

    # masked_softmax == masked_fill(~mask, -1e9) in the reference module (no exp/normalize)
    keep = mask_ref[...] != 0                                      # (Bt, N) bool
    score_ref[...] = jnp.where(keep, simi, NEG_FILL).astype(score_ref.dtype)

    # Normalized embeddings are also returned by the module (cast only on store).
    m_out_ref[...] = m_nrm.astype(m_out_ref.dtype)
    e_out_ref[...] = e_nrm.astype(e_out_ref.dtype)


def _el_norm_only_kernel(mention_ref, entity_ref, m_out_ref, e_out_ref):
    # Training/contrastive branch: score is discarded upstream, so only normalize.
    m = mention_ref[...].astype(jnp.float32)
    e = entity_ref[...].astype(jnp.float32)
    m_out_ref[...] = (m * lax.rsqrt(jnp.sum(m * m, axis=-1, keepdims=True))
                      ).astype(m_out_ref.dtype)
    e_out_ref[...] = (e * lax.rsqrt(jnp.sum(e * e, axis=-1, keepdims=True))
                      ).astype(e_out_ref.dtype)


def _pick_block_batch(N, D, e_out_bytes):
    """Batch rows per grid step: multiple of 8 (full sublanes), sized so the
    double-buffered entity in/out tiles stay well under the 32 MiB default
    scoped VMEM limit (safe on v7x's 64 MiB physical VMEM as well)."""
    per_row = 2 * (N * D * 4            # entity in (f32), double-buffered
                   + N * D * e_out_bytes  # entity out, double-buffered
                   + 2 * D * 4            # mention in + out
                   + 2 * N * 4)           # mask in + score out
    budget = 24 << 20                    # headroom under the 32 MiB default
    bt = budget // max(per_row, 1)
    return int(max(8, (bt // 8) * 8))


def v2vel_forward(mention_embed, entity_embeds, labels, entity_mask,
                  is_train=False, is_contrastive=False,
                  entity_out_dtype=jnp.float32, block_batch=None):
    """Pallas implementation of V2VELCLIPAttributeFromSBERTText.forward
    (post-encoder part). Returns (score, labels, mention_embed, entity_embed)."""
    B, D = mention_embed.shape
    _, N, _ = entity_embeds.shape
    e_out_bytes = jnp.dtype(entity_out_dtype).itemsize

    bt = block_batch if block_batch is not None else _pick_block_batch(N, D, e_out_bytes)
    if B <= bt:
        bt = B                      # single grid step, block == full array dims
        b_pad = B
    else:
        b_pad = pl.cdiv(B, bt) * bt  # sublane-aligned tiles, pad the batch

    m_in = mention_embed
    e_in = entity_embeds
    mask_i32 = entity_mask.astype(jnp.int32)
    if b_pad != B:
        pad = b_pad - B
        # Pad embeddings with ones (avoids NaN from normalizing zero rows); padded
        # rows are sliced off below.
        m_in = jnp.pad(m_in, ((0, pad), (0, 0)), constant_values=1.0)
        e_in = jnp.pad(e_in, ((0, pad), (0, 0), (0, 0)), constant_values=1.0)
        mask_i32 = jnp.pad(mask_i32, ((0, pad), (0, 0)))

    grid = (b_pad // bt,)
    cparams = pltpu.CompilerParams(dimension_semantics=("parallel",))

    if is_train and is_contrastive:
        # Score is just the labels in this branch: skip the score compute/writeback.
        ce = pl.CostEstimate(
            flops=4 * b_pad * N * D,
            transcendentals=b_pad * (N + 1),
            bytes_accessed=b_pad * N * D * (4 + e_out_bytes) + b_pad * D * 8)
        m_nrm, e_nrm = pl.pallas_call(
            _el_norm_only_kernel,
            out_shape=(
                jax.ShapeDtypeStruct((b_pad, D), jnp.float32),
                jax.ShapeDtypeStruct((b_pad, N, D), entity_out_dtype),
            ),
            grid=grid,
            in_specs=[
                pl.BlockSpec((bt, D), lambda b: (b, 0)),
                pl.BlockSpec((bt, N, D), lambda b: (b, 0, 0)),
            ],
            out_specs=(
                pl.BlockSpec((bt, D), lambda b: (b, 0)),
                pl.BlockSpec((bt, N, D), lambda b: (b, 0, 0)),
            ),
            compiler_params=cparams,
            cost_estimate=ce,
        )(m_in, e_in)
        m_nrm = m_nrm[:B]
        e_nrm = e_nrm[:B]
        # mention_embed.view(batch_size, -1, 1)
        return labels, labels, m_nrm.reshape(B, D, 1), e_nrm

    ce = pl.CostEstimate(
        flops=5 * b_pad * N * D,
        transcendentals=b_pad * (N + 1),
        bytes_accessed=(b_pad * N * D * (4 + e_out_bytes)   # entity in + out
                        + b_pad * D * 8                     # mention in + out
                        + b_pad * N * 8))                   # mask in + score out

    score, m_nrm, e_nrm = pl.pallas_call(
        _el_norm_score_kernel,
        out_shape=(
            jax.ShapeDtypeStruct((b_pad, N), jnp.float32),
            jax.ShapeDtypeStruct((b_pad, D), jnp.float32),
            jax.ShapeDtypeStruct((b_pad, N, D), entity_out_dtype),
        ),
        grid=grid,
        in_specs=[
            pl.BlockSpec((bt, D), lambda b: (b, 0)),
            pl.BlockSpec((bt, N, D), lambda b: (b, 0, 0)),
            pl.BlockSpec((bt, N), lambda b: (b, 0)),
        ],
        out_specs=(
            pl.BlockSpec((bt, N), lambda b: (b, 0)),
            pl.BlockSpec((bt, D), lambda b: (b, 0)),
            pl.BlockSpec((bt, N, D), lambda b: (b, 0, 0)),
        ),
        compiler_params=cparams,
        cost_estimate=ce,
    )(m_in, e_in, mask_i32)

    score = score[:B]
    m_nrm = m_nrm[:B]
    e_nrm = e_nrm[:B]

    # mention_embed.view(batch_size, -1, 1)
    return score, labels, m_nrm.reshape(B, D, 1), e_nrm


def _reference(mention_embed, entity_embeds, labels, entity_mask):
    m = mention_embed / jnp.linalg.norm(mention_embed, axis=-1, keepdims=True)
    e = entity_embeds / jnp.linalg.norm(entity_embeds, axis=-1, keepdims=True)
    B, D = m.shape
    simi = jnp.einsum('bnd,bd->bn', e, m)
    score = jnp.where(entity_mask, simi, NEG_FILL)
    return score, labels, m.reshape(B, D, 1), e


if __name__ == "__main__":
    key = jax.random.PRNGKey(0)
    k1, k2, k3, k4 = jax.random.split(key, 4)

    # ---- Test 1: small shapes, single grid step ----
    B, N, D = 2, 8, 32   # batch, candidate entities per mention, embedding dim
    mention_embed = jax.random.normal(k1, (B, D), dtype=jnp.float32)
    entity_embeds = jax.random.normal(k2, (B, N, D), dtype=jnp.float32)
    labels = jnp.zeros((B,), dtype=jnp.int32)
    # Ragged candidate lists: batch 0 has 6 valid entities, batch 1 has 8.
    entity_mask = jnp.array(
        [[True] * 6 + [False] * 2,
         [True] * 8], dtype=jnp.bool_)

    score, out_labels, mention_out, entity_out = v2vel_forward(
        mention_embed, entity_embeds, labels, entity_mask,
        is_train=False, is_contrastive=False)
    jax.block_until_ready((score, out_labels, mention_out, entity_out))

    ref_score, _, ref_mention, ref_entity = _reference(
        mention_embed, entity_embeds, labels, entity_mask)

    assert score.shape == (B, N)
    assert mention_out.shape == (B, D, 1)
    assert entity_out.shape == (B, N, D)
    assert jnp.allclose(score, ref_score, atol=1e-5, rtol=1e-5)
    assert jnp.allclose(mention_out, ref_mention, atol=1e-5, rtol=1e-5)
    assert jnp.allclose(entity_out, ref_entity, atol=1e-5, rtol=1e-5)

    # ---- Test 2: larger batch, forced small block -> tiled + padded grid path ----
    B2 = 20
    mention2 = jax.random.normal(k3, (B2, D), dtype=jnp.float32)
    entity2 = jax.random.normal(k4, (B2, N, D), dtype=jnp.float32)
    labels2 = jnp.zeros((B2,), dtype=jnp.int32)
    mask2 = jnp.ones((B2, N), dtype=jnp.bool_).at[:, -2:].set(False)

    score2, _, mention_out2, entity_out2 = v2vel_forward(
        mention2, entity2, labels2, mask2, block_batch=8)
    jax.block_until_ready((score2, mention_out2, entity_out2))

    ref_score2, _, ref_mention2, ref_entity2 = _reference(
        mention2, entity2, labels2, mask2)
    assert score2.shape == (B2, N)
    assert jnp.allclose(score2, ref_score2, atol=1e-5, rtol=1e-5)
    assert jnp.allclose(mention_out2, ref_mention2, atol=1e-5, rtol=1e-5)
    assert jnp.allclose(entity_out2, ref_entity2, atol=1e-5, rtol=1e-5)

    # ---- Test 3: training/contrastive branch (normalize-only kernel) ----
    c_score, c_labels, c_mention, c_entity = v2vel_forward(
        mention_embed, entity_embeds, labels, entity_mask,
        is_train=True, is_contrastive=True)
    jax.block_until_ready((c_score, c_labels, c_mention, c_entity))
    assert jnp.array_equal(c_score, labels)
    assert jnp.allclose(c_mention, ref_mention, atol=1e-5, rtol=1e-5)
    assert jnp.allclose(c_entity, ref_entity, atol=1e-5, rtol=1e-5)

    print("KERNEL_OK")
</pallas_src>

<mosaic_0001>
module attributes {stable_mosaic.version = 11 : i64} {
  func.func @_el_norm_score_kernel(%arg0: i32, %arg1: memref<2x32xf32, #tpu.memory_space<vmem>>, %arg2: memref<2x8x32xf32, #tpu.memory_space<vmem>>, %arg3: memref<2x8xi32, #tpu.memory_space<vmem>>, %arg4: memref<2x8xf32, #tpu.memory_space<vmem>>, %arg5: memref<2x32xf32, #tpu.memory_space<vmem>>, %arg6: memref<2x8x32xf32, #tpu.memory_space<vmem>>) attributes {dimension_semantics = [#tpu.dimension_semantics<parallel>], iteration_bounds = array<i64: 1>, scalar_prefetch = 0 : i64, scratch_operands = 0 : i64, tpu.core_type = #tpu.core_type<tc>, window_params = [{transform_indices = @transform_0, window_bounds = array<i64: 2, 32>}, {transform_indices = @transform_1, window_bounds = array<i64: 2, 8, 32>}, {transform_indices = @transform_2, window_bounds = array<i64: 2, 8>}, {transform_indices = @transform_3, window_bounds = array<i64: 2, 8>}, {transform_indices = @transform_4, window_bounds = array<i64: 2, 32>}, {transform_indices = @transform_5, window_bounds = array<i64: 2, 8, 32>}]} {
    %c0 = arith.constant 0 : index
    %c0_0 = arith.constant 0 : index
    %0 = vector.load %arg1[%c0, %c0_0] : memref<2x32xf32, #tpu.memory_space<vmem>>, vector<2x32xf32>
    %c0_1 = arith.constant 0 : index
    %c0_2 = arith.constant 0 : index
    %c0_3 = arith.constant 0 : index
    %1 = vector.load %arg2[%c0_1, %c0_2, %c0_3] : memref<2x8x32xf32, #tpu.memory_space<vmem>>, vector<2x8x32xf32>
    %2 = arith.mulf %0, %0 : vector<2x32xf32>
    %cst = arith.constant dense<0.000000e+00> : vector<2xf32>
    %3 = vector.multi_reduction <add>, %2, %cst [1] : vector<2x32xf32> to vector<2xf32>
    %4 = vector.shape_cast %3 : vector<2xf32> to vector<2x1xf32>
    %5 = math.rsqrt %4 : vector<2x1xf32>
    %6 = vector.broadcast %5 : vector<2x1xf32> to vector<2x32xf32>
    %7 = arith.mulf %0, %6 : vector<2x32xf32>
    %8 = arith.mulf %1, %1 : vector<2x8x32xf32>
    %cst_4 = arith.constant dense<0.000000e+00> : vector<2x8xf32>
    %9 = vector.multi_reduction <add>, %8, %cst_4 [2] : vector<2x8x32xf32> to vector<2x8xf32>
    %10 = vector.shape_cast %9 : vector<2x8xf32> to vector<2x8x1xf32>
    %11 = math.rsqrt %10 : vector<2x8x1xf32>
    %12 = vector.broadcast %11 : vector<2x8x1xf32> to vector<2x8x32xf32>
    %13 = arith.mulf %1, %12 : vector<2x8x32xf32>
    %14 = vector.shape_cast %7 : vector<2x32xf32> to vector<2x1x32xf32>
    %15 = vector.broadcast %14 : vector<2x1x32xf32> to vector<2x8x32xf32>
    %16 = arith.mulf %13, %15 : vector<2x8x32xf32>
    %cst_5 = arith.constant dense<0.000000e+00> : vector<2x8xf32>
    %17 = vector.multi_reduction <add>, %16, %cst_5 [2] : vector<2x8x32xf32> to vector<2x8xf32>
    %c0_6 = arith.constant 0 : index
    %c0_7 = arith.constant 0 : index
    %18 = vector.load %arg3[%c0_6, %c0_7] : memref<2x8xi32, #tpu.memory_space<vmem>>, vector<2x8xi32>
    %c0_i32 = arith.constant 0 : i32
    %19 = vector.broadcast %c0_i32 : i32 to vector<2x8xi32>
    %20 = arith.cmpi ne, %18, %19 : vector<2x8xi32>
    %cst_8 = arith.constant -1.000000e+09 : f32
    %21 = vector.broadcast %cst_8 : f32 to vector<2x8xf32>
    %22 = arith.select %20, %17, %21 : vector<2x8xi1>, vector<2x8xf32>
    %c0_9 = arith.constant 0 : index
    %c0_10 = arith.constant 0 : index
    %23 = vector.load %arg4[%c0_9, %c0_10] : memref<2x8xf32, #tpu.memory_space<vmem>>, vector<2x8xf32>
    tpu.vector_store %arg4[%c0_9, %c0_10], %22 {strides = array<i32>} : memref<2x8xf32, #tpu.memory_space<vmem>>, vector<2x8xf32>,
    %c0_11 = arith.constant 0 : index
    %c0_12 = arith.constant 0 : index
    %24 = vector.load %arg5[%c0_11, %c0_12] : memref<2x32xf32, #tpu.memory_space<vmem>>, vector<2x32xf32>
    tpu.vector_store %arg5[%c0_11, %c0_12], %7 {strides = array<i32>} : memref<2x32xf32, #tpu.memory_space<vmem>>, vector<2x32xf32>,
    %c0_13 = arith.constant 0 : index
    %c0_14 = arith.constant 0 : index
    %c0_15 = arith.constant 0 : index
    %25 = vector.load %arg6[%c0_13, %c0_14, %c0_15] : memref<2x8x32xf32, #tpu.memory_space<vmem>>, vector<2x8x32xf32>
    tpu.vector_store %arg6[%c0_13, %c0_14, %c0_15], %13 {strides = array<i32>} : memref<2x8x32xf32, #tpu.memory_space<vmem>>, vector<2x8x32xf32>,
    return
  }
  func.func @transform_0(%arg0: i32) -> (i32, i32) {
    %c0_i32 = arith.constant 0 : i32
    %c0_i32_0 = arith.constant 0 : i32
    return %arg0, %c0_i32 : i32, i32
  }
  func.func @transform_1(%arg0: i32) -> (i32, i32, i32) {
    %c0_i32 = arith.constant 0 : i32
    %c0_i32_0 = arith.constant 0 : i32
    %c0_i32_1 = arith.constant 0 : i32
    return %arg0, %c0_i32, %c0_i32_0 : i32, i32, i32
  }
  func.func @transform_2(%arg0: i32) -> (i32, i32) {
    %c0_i32 = arith.constant 0 : i32
    %c0_i32_0 = arith.constant 0 : i32
    return %arg0, %c0_i32 : i32, i32
  }
  func.func @transform_3(%arg0: i32) -> (i32, i32) {
    %c0_i32 = arith.constant 0 : i32
    %c0_i32_0 = arith.constant 0 : i32
    return %arg0, %c0_i32 : i32, i32
  }
  func.func @transform_4(%arg0: i32) -> (i32, i32) {
    %c0_i32 = arith.constant 0 : i32
    %c0_i32_0 = arith.constant 0 : i32
    return %arg0, %c0_i32 : i32, i32
  }
  func.func @transform_5(%arg0: i32) -> (i32, i32, i32) {
    %c0_i32 = arith.constant 0 : i32
    %c0_i32_0 = arith.constant 0 : i32
    %c0_i32_1 = arith.constant 0 : i32
    return %arg0, %c0_i32, %c0_i32_0 : i32, i32, i32
  }
}

</mosaic_0001>

<llo_original>
// kernel: tpu_custom_call.1
$region0: #{tpu_custom_call.1}
  #allocation0 [shape = 'u32[]', space=smem, size = 0x4, offset = 0x4, fixed_abs, tag = 'smem constant byte address 0x4 - core index']
  #allocation1 [shape = 'u32[144,128]{1,0:T(1,128)}', space=vmem, size = 0x12000, scoped, tag = 'internal scratch']
  %s0 = inlined_call_operand.hbm [shape: f32[2,32], index: 0, kind: input, shape index: {}]
  %s1 = inlined_call_operand.hbm [shape: f32[2,8,32], index: 1, kind: input, shape index: {}]
  %s2 = inlined_call_operand.vmem [shape: s32[2,8], index: 2, kind: input, shape index: {}]
  %s3 = inlined_call_operand.hbm [shape: f32[2,8], index: 3, kind: output, shape index: {0}]
  %s4 = inlined_call_operand.hbm [shape: f32[2,32], index: 4, kind: output, shape index: {1}]
  %s5 = inlined_call_operand.hbm [shape: f32[2,8,32], index: 5, kind: output, shape index: {2}]
  %6 = xla_tuple %s3, %s4, %s5
  %s7 = sld [smem:[#allocation0]]
  $region46: #{tpu_custom_call.1} parent=0
    _
  %s9 = ssub.s32 1, %s7
  %s10 = scalar_select 0, %s9, %s7
  $region1: #{tpu_custom_call.1} parent=0
    #allocation2 [shape = 'u8[1024]{0}', space=vmem, size = 0x400, scoped, tag = 'input window, operand 0, single buffered']
    #allocation3 [shape = 's32[1]{0}', space=sflag, size = 0x4, scoped, tag = 'scoped memory for tpu_custom_call.1']
    #allocation4 [shape = 's32[1]{0}', space=sflag, size = 0x4, scoped, tag = 'scoped memory for tpu_custom_call.1']
    #allocation5 [shape = 'u8[8192]{0}', space=vmem, size = 0x2000, scoped, tag = 'input window, operand 1, single buffered']
    #allocation6 [shape = 's32[1]{0}', space=sflag, size = 0x4, scoped, tag = 'scoped memory for tpu_custom_call.1']
    #allocation7 [shape = 'u8[1024]{0}', space=vmem, size = 0x400, scoped, tag = 'output window, operand 0, single buffered']
    #allocation8 [shape = 'u8[1024]{0}', space=vmem, size = 0x400, scoped, tag = 'output window, operand 1, single buffered']
    #allocation9 [shape = 's32[1]{0}', space=sflag, size = 0x4, scoped, tag = 'scoped memory for tpu_custom_call.1']
    #allocation10 [shape = 'u8[8192]{0}', space=vmem, size = 0x2000, scoped, tag = 'output window, operand 2, single buffered']
    %11 = vsyncpa [#allocation3], 0
    %12 = vsyncpa [#allocation6], 0
    %13 = vsyncpa [#allocation4], 0
    %14 = vsyncpa [#allocation9], 0
    // Predicated region
    $region2: #{tpu_custom_call.1} parent=1 // pred_check
      _
    $region3: #{tpu_custom_call.1} parent=1 // pred_check_branch
      %16 = sbr.rel (0) target = $region5
    $region4: #{tpu_custom_call.1} parent=1 // pred_region
      %s18 = ssub.s32 32, 32
      %19 = vsyncadd [#allocation3], %s18
      %s21 = sshll.u32 [#allocation2], 4
      %s22 = int_to_ptr.vmem [resolvable:$true] %s21
      %24 = dma.hbm_to_vmem [thread:$0]  %s0, 32, %s22, [#allocation3]
    $region5: #{tpu_custom_call.1} parent=1 // pred_fallthru
      _
    // Predicated region
    $region6: #{tpu_custom_call.1} parent=1 // pred_check
      _
    $region7: #{tpu_custom_call.1} parent=1 // pred_check_branch
      %26 = sbr.rel (0) target = $region9
    $region8: #{tpu_custom_call.1} parent=1 // pred_region
      %s28 = ssub.s32 256, 256
      %29 = vsyncadd [#allocation6], %s28
      %s30 = sshll.u32 [#allocation5], 4
      %s31 = int_to_ptr.vmem [resolvable:$true] %s30
      %36 = dma.hbm_to_vmem [thread:$0]  %s1, 256, %s31, [#allocation6], 128, 128, 8
    $region9: #{tpu_custom_call.1} parent=1 // pred_fallthru
      _
    // Predicated region
    $region10: #{tpu_custom_call.1} parent=1 // pred_check
      _
    $region11: #{tpu_custom_call.1} parent=1 // pred_check_branch
      %38 = sbr.rel (0) target = $region13
    $region12: #{tpu_custom_call.1} parent=1 // pred_region
      _
    $region13: #{tpu_custom_call.1} parent=1 // pred_fallthru
      _
    // Predicated region
    $region14: #{tpu_custom_call.1} parent=1 // pred_check
      _
    $region15: #{tpu_custom_call.1} parent=1 // pred_check_branch
      %40 = sbr.rel (0) target = $region17
    $region16: #{tpu_custom_call.1} parent=1 // pred_region
      %41 = dma.done [#allocation3], 32
    $region17: #{tpu_custom_call.1} parent=1 // pred_fallthru
      _
    // Predicated region
    $region18: #{tpu_custom_call.1} parent=1 // pred_check
      _
    $region19: #{tpu_custom_call.1} parent=1 // pred_check_branch
      %43 = sbr.rel (0) target = $region21
    $region20: #{tpu_custom_call.1} parent=1 // pred_region
      %44 = dma.done [#allocation6], 256
    $region21: #{tpu_custom_call.1} parent=1 // pred_fallthru
      _
    %v45 = vld [vmem:[#allocation2] sm:$0x3]
    %v46 = vld [vmem:[#allocation5] sm:$0xff]
    %v47 = vld [vmem:[#allocation5 + $0x8] sm:$0xff]
    %v48 = vmul.f32 %v45, %v45
    %vm49 = vcmask 254976
    %v50 = vsel %vm49, %v48, 0.0
    %51 = vadd.xlane.f32.xlu0 %v50
    %v52 = vpop.xlane.xlu0 %51
    %v53 = vrsqrt.pop %v52
    %v54 = vmul.f32 %v45, %v53
    %v55 = vmul.f32 %v46, %v46
    %v56 = vmul.f32 %v47, %v47
    %vm57 = vcmask 261120
    %v58 = vsel %vm57, %v55, 0.0
    %59 = vadd.xlane.f32.xlu0 %v58
    %v60 = vpop.xlane.xlu0 %59
    %v61 = vsel %vm57, %v56, 0.0
    %62 = vadd.xlane.f32.xlu0 %v61
    %v63 = vpop.xlane.xlu0 %62
    %v64 = vrsqrt.pop %v60
    %v65 = vrsqrt.pop %v63
    %v66 = vmul.f32 %v46, %v64
    %v67 = vmul.f32 %v47, %v65
    %v70 = vunpack.c.l.s4 1966171168
    %v71 = vunpack.c.0.s8 %v70
    %v72 = vlaneseq
    %v73 = vshrl.u32 %v72, 7
    %v74 = vsub.s32 %v71, %v73
    %v75 = vrot.slane %v54, %v74
    %v76 = vcombine.high %v75, %v75
    %v78 = vunpack.c.l.s4 1966171168
    %v79 = vunpack.c.0.s8 %v78
    %v80 = vlaneseq
    %v81 = vshrl.u32 %v80, 7
    %v82 = vsub.s32 %v79, %v81
    %v83 = vrot.slane %v75, %v82
    %v85 = vunpack.c.l.s4 1966171168
    %v86 = vunpack.c.0.s8 %v85
    %v87 = vlaneseq
    %v88 = vshrl.u32 %v87, 7
    %v89 = vsub.s32 %v86, %v88
    %v90 = vrot.slane %v76, %v89
    %v91 = vlaneseq
    %v92 = vshrl.u32 %v91, 7
    %v93 = vsub.s32 0, %v92
    %v94 = vrot.slane %v83, %v93
    %v95 = vlaneseq
    %v96 = vshrl.u32 %v95, 7
    %v97 = vsub.s32 0, %v96
    %v98 = vrot.slane %v90, %v97
    %v101 = vmul.f32 %v66, %v94
    %v102 = vmul.f32 %v67, %v98
    %v103 = vsel %vm57, %v101, 0.0
    %104 = vadd.xlane.f32.xlu0 %v103
    %v105 = vpop.xlane.xlu0 %104
    %v106 = vsel %vm57, %v102, 0.0
    %107 = vadd.xlane.f32.xlu0 %v106
    %v108 = vpop.xlane.xlu0 %107
    %v109 = vld [vmem:[%s2] sm:$0x3]
    %vm110 = vcmp.ne.s32.totalorder %v109, 0
    %v113 = vlaneseq
    %v114 = vand.u32 %v113, 127
    %v115 = vlaneseq
    %v116 = vshrl.u32 %v115, 7
    %v117 = vsub.s32 %v114, %v116
    %v118 = vrot.slane %v105, %v117
    %v119 = vlaneseq
    %v120 = vshrl.u32 %v119, 7
    %v121 = vsub.s32 %v114, %v120
    %v122 = vrot.slane %v108, %v121
    %vm123 = vcmask 1041409
    %v124 = vsel %vm123, %v122, %v118
    %v126 = vsel %vm110, %v124, -1e+09
    %vm127 = vcmask 58368
    %128 = vst.msk [vmem:[#allocation7] sm:$0x3] %vm127, %v126
    %129 = vst.msk [vmem:[#allocation8] sm:$0x3] %vm49, %v54
    %130 = vst.msk [vmem:[#allocation10] sm:$0xff] %vm57, %v66
    %131 = vst.msk [vmem:[#allocation10 + $0x8] sm:$0xff] %vm57, %v67
    // Predicated region
    $region22: #{tpu_custom_call.1} parent=1 // pred_check
      _
    $region23: #{tpu_custom_call.1} parent=1 // pred_check_branch
      %133 = sbr.rel (0) target = $region25
    $region24: #{tpu_custom_call.1} parent=1 // pred_region
      %s135 = ssub.s32 32, 32
      %136 = vsyncadd [#allocation4], %s135
      %s138 = sshll.u32 [#allocation7], 4
      %s139 = int_to_ptr.vmem [resolvable:$true] %s138
      %141 = dma.vmem_to_hbm [thread:$0]  %s139, 32, %s3, [#allocation4]
    $region25: #{tpu_custom_call.1} parent=1 // pred_fallthru
      _
    // Predicated region
    $region26: #{tpu_custom_call.1} parent=1 // pred_check
      _
    $region27: #{tpu_custom_call.1} parent=1 // pred_check_branch
      %143 = sbr.rel (0) target = $region29
    $region28: #{tpu_custom_call.1} parent=1 // pred_region
      %s145 = ssub.s32 32, 32
      %146 = vsyncadd [#allocation9], %s145
      %s148 = sshll.u32 [#allocation8], 4
      %s149 = int_to_ptr.vmem [resolvable:$true] %s148
      %151 = dma.vmem_to_hbm [thread:$0]  %s149, 32, %s4, [#allocation9]
    $region29: #{tpu_custom_call.1} parent=1 // pred_fallthru
      _
    // Predicated region
    $region30: #{tpu_custom_call.1} parent=1 // pred_check
      _
    $region31: #{tpu_custom_call.1} parent=1 // pred_check_branch
      %153 = sbr.rel (0) target = $region33
    $region32: #{tpu_custom_call.1} parent=1 // pred_region
      %s155 = ssub.s32 256, 256
      %156 = vsyncadd [#allocation9], %s155
      %s157 = sshll.u32 [#allocation10], 4
      %s158 = int_to_ptr.vmem [resolvable:$true] %s157
      %163 = dma.vmem_to_hbm [thread:$0]  %s158, 256, %s5, [#allocation9], 128, 128, 8
    $region33: #{tpu_custom_call.1} parent=1 // pred_fallthru
      _
    // Predicated region
    $region34: #{tpu_custom_call.1} parent=1 // pred_check
      _
    $region35: #{tpu_custom_call.1} parent=1 // pred_check_branch
      %165 = sbr.rel (0) target = $region37
    $region36: #{tpu_custom_call.1} parent=1 // pred_region
      %166 = dma.done [#allocation4], 32
    $region37: #{tpu_custom_call.1} parent=1 // pred_fallthru
      _
    // Predicated region
    $region38: #{tpu_custom_call.1} parent=1 // pred_check
      _
    $region39: #{tpu_custom_call.1} parent=1 // pred_check_branch
      %168 = sbr.rel (0) target = $region41
    $region40: #{tpu_custom_call.1} parent=1 // pred_region
      %169 = dma.done [#allocation9], 32
    $region41: #{tpu_custom_call.1} parent=1 // pred_fallthru
      _
    // Predicated region
    $region42: #{tpu_custom_call.1} parent=1 // pred_check
      _
    $region43: #{tpu_custom_call.1} parent=1 // pred_check_branch
      %171 = sbr.rel (0) target = $region45
    $region44: #{tpu_custom_call.1} parent=1 // pred_region
      %172 = dma.done [#allocation9], 256
    $region45: #{tpu_custom_call.1} parent=1 // pred_fallthru
      _
    %173 = vsyncpa [#allocation3], 1
    %174 = vsyncpa [#allocation6], 1
    %175 = vsyncpa [#allocation4], 1
    %176 = vsyncpa [#allocation9], 1

</llo_original>
